<compile_context>
chip_gen: v7x
topology: tpu7x:2x2x1
jax: 0.10.0
libtpu: 0.0.40
codegen_flags: <defaults>
</compile_context>

<pallas_src>
import functools

import jax
import jax.numpy as jnp
from jax.experimental import pallas as pl
from jax.experimental.pallas import tpu as pltpu


def _concat_scale_linear_kernel(ctx_ref, x_ref,
                                wt_ref, b_ref,
                                wgt_ref, bg_ref,
                                wbt_ref,
                                out_ref,
                                gate_ref, shift_ref):
    """One (batch, seq-tile) grid point.

    ctx_ref  : (1, 1+dim_c)        — this batch's context row
    x_ref    : (TS, dim_in)        — seq tile of x for this batch
    wt_ref   : (dim_in, DO)        — main weight, pre-transposed, out-padded
    b_ref    : (1, DO)             — main bias (padded)
    wgt_ref  : (1+dim_c, DO)       — hyper-gate weight, pre-transposed (padded)
    bg_ref   : (1, DO)             — hyper-gate bias (padded)
    wbt_ref  : (1+dim_c, DO)       — hyper-bias weight, pre-transposed (padded)
    out_ref  : (TS, DO)
    gate_ref, shift_ref : (1, DO) f32 scratch, persistent across seq tiles.
    """
    # Hoist the hyper-network: recompute only on the first seq tile of a batch.
    @pl.when(pl.program_id(1) == 0)
    def _():
        ctx = ctx_ref[...].astype(jnp.float32)
        gate = jnp.dot(ctx, wgt_ref[...].astype(jnp.float32),
                       preferred_element_type=jnp.float32)
        gate = gate + bg_ref[...].astype(jnp.float32)
        hbias = jnp.dot(ctx, wbt_ref[...].astype(jnp.float32),
                        preferred_element_type=jnp.float32)
        gate_ref[...] = gate
        # Fold the main bias into the shift: (x@W^T + b)*g + hb = (x@W^T)*g + (b*g + hb)
        shift_ref[...] = b_ref[...].astype(jnp.float32) * gate + hbias

    # Main matmul: native-dtype operands, f32 accumulation on the MXU.
    h = jnp.dot(x_ref[...], wt_ref[...], preferred_element_type=jnp.float32)
    # Single FMA epilogue, lane-dense store.
    out_ref[...] = (h * gate_ref[...] + shift_ref[...]).astype(out_ref.dtype)


def _pick_seq_tile(seq_len):
    """Largest tile (multiple of 8, <=1024) that divides seq_len; else the full axis."""
    for ts in (1024, 512, 256, 128, 64, 32, 16, 8):
        if seq_len % ts == 0:
            return ts
    return seq_len


def concat_scale_linear(context, x, params):
    """Pallas wrapper. Handles both 2-D (B, dim_in) and 3-D (B, S, dim_in) x."""
    w, b, wg, bg, wb = (params["w"], params["b"],
                        params["wg"], params["bg"], params["wb"])

    squeeze_seq = False
    if x.ndim == 2:
        # 2-D case is equivalent to S=1 with the result squeezed.
        x = x[:, None, :]
        squeeze_seq = True

    B, S, dim_in = x.shape
    dim_out = w.shape[0]
    C1 = context.shape[-1]                       # 1 + dim_c

    # Pad dim_out up to a lane-dense multiple of 128 (unmasked vector stores).
    DO = 128 * ((dim_out + 127) // 128)
    pad = DO - dim_out

    wt = w.T                                      # (dim_in, dim_out)
    wgt = wg.T                                    # (C1, dim_out)
    wbt = wb.T
    b2 = b.reshape(1, -1)
    bg2 = bg.reshape(1, -1)
    if pad:
        wt = jnp.pad(wt, ((0, 0), (0, pad)))
        wgt = jnp.pad(wgt, ((0, 0), (0, pad)))
        wbt = jnp.pad(wbt, ((0, 0), (0, pad)))
        b2 = jnp.pad(b2, ((0, 0), (0, pad)))
        bg2 = jnp.pad(bg2, ((0, 0), (0, pad)))

    ctx3 = context.reshape(B, 1, C1)              # (B, 1, C1) for per-batch blocking

    TS = _pick_seq_tile(S)
    grid = (B, S // TS)

    # VMEM budget: double-buffered x/out tiles + resident (small) weights + scratch.
    act_itemsize = jnp.dtype(x.dtype).itemsize
    w_itemsize = jnp.dtype(w.dtype).itemsize
    tile_bytes = TS * (dim_in + DO) * act_itemsize
    weight_bytes = (dim_in * DO + 2 * C1 * DO + 2 * DO) * w_itemsize
    vmem_needed = 2 * tile_bytes + 2 * weight_bytes + 2 * DO * 4 + 2 * B * C1 * act_itemsize
    vmem_limit = int(min(max(4 * vmem_needed, 16 * 1024 * 1024), 32 * 1024 * 1024))

    cost = pl.CostEstimate(
        flops=2 * B * S * dim_in * dim_out + 4 * B * C1 * dim_out,
        transcendentals=0,
        bytes_accessed=(x.size * act_itemsize
                        + B * S * dim_out * act_itemsize
                        + (w.size + wg.size + wb.size + b.size + bg.size) * w_itemsize
                        + context.size * act_itemsize),
    )

    out = pl.pallas_call(
        _concat_scale_linear_kernel,
        out_shape=jax.ShapeDtypeStruct((B, S, DO), x.dtype),
        grid=grid,
        in_specs=[
            pl.BlockSpec((None, 1, C1), lambda bi, si: (bi, 0, 0)),        # context row
            pl.BlockSpec((None, TS, dim_in), lambda bi, si: (bi, si, 0)),  # x tile
            pl.BlockSpec((dim_in, DO), lambda bi, si: (0, 0)),             # w^T
            pl.BlockSpec((1, DO), lambda bi, si: (0, 0)),                  # b
            pl.BlockSpec((C1, DO), lambda bi, si: (0, 0)),                 # wg^T
            pl.BlockSpec((1, DO), lambda bi, si: (0, 0)),                  # bg
            pl.BlockSpec((C1, DO), lambda bi, si: (0, 0)),                 # wb^T
        ],
        out_specs=pl.BlockSpec((None, TS, DO), lambda bi, si: (bi, si, 0)),
        scratch_shapes=[
            pltpu.VMEM((1, DO), jnp.float32),   # gate (per batch)
            pltpu.VMEM((1, DO), jnp.float32),   # shift = b*gate + hyper_bias
        ],
        compiler_params=pltpu.CompilerParams(
            dimension_semantics=("parallel", "arbitrary"),
            vmem_limit_bytes=vmem_limit,
        ),
        cost_estimate=cost,
    )(ctx3, x, wt, b2, wgt, bg2, wbt)

    if pad:
        out = out[..., :dim_out]
    if squeeze_seq:
        out = out[:, 0, :]
    return out


def init_params(key, dim_in, dim_out, dim_c, dtype=jnp.float32):
    """Deterministic init matching nn.Linear shapes (uniform +/- 1/sqrt(fan_in))."""
    k1, k2, k3, k4, k5 = jax.random.split(key, 5)
    lim_main = 1.0 / jnp.sqrt(dim_in)
    lim_hyper = 1.0 / jnp.sqrt(1 + dim_c)
    return {
        "w":  jax.random.uniform(k1, (dim_out, dim_in), dtype, -lim_main, lim_main),
        "b":  jax.random.uniform(k2, (dim_out,), dtype, -lim_main, lim_main),
        "wg": jax.random.uniform(k3, (dim_out, 1 + dim_c), dtype, -lim_hyper, lim_hyper),
        "bg": jax.random.uniform(k4, (dim_out,), dtype, -lim_hyper, lim_hyper),
        "wb": jax.random.uniform(k5, (dim_out, 1 + dim_c), dtype, -lim_hyper, lim_hyper),
    }


def concat_scale_linear_ref(context, x, params):
    """Pure-JAX reference mirroring the PyTorch forward."""
    gate = context @ params["wg"].T + params["bg"]
    bias = context @ params["wb"].T
    if x.ndim == 3:
        gate = gate[:, None, :]
        bias = bias[:, None, :]
    return (x @ params["w"].T + params["b"]) * gate + bias


if __name__ == "__main__":
    B, S, dim_in, dim_out, dim_c = 2, 8, 32, 32, 4

    key = jax.random.PRNGKey(0)
    kp, kc, kx = jax.random.split(key, 3)

    params = init_params(kp, dim_in, dim_out, dim_c)
    context = jax.random.normal(kc, (B, 1 + dim_c), jnp.float32)
    x = jax.random.normal(kx, (B, S, dim_in), jnp.float32)

    out = jax.block_until_ready(concat_scale_linear(context, x, params))
    ref = concat_scale_linear_ref(context, x, params)
    assert out.shape == (B, S, dim_out)
    assert jnp.allclose(out, ref, atol=1e-5, rtol=1e-5), "mismatch vs reference (3-D x)"

    # also exercise the 2-D x path
    x2 = x[:, 0, :]
    out2 = jax.block_until_ready(concat_scale_linear(context, x2, params))
    ref2 = concat_scale_linear_ref(context, x2, params)
    assert out2.shape == (B, dim_out)
    assert jnp.allclose(out2, ref2, atol=1e-5, rtol=1e-5), "mismatch vs reference (2-D x)"

    print("KERNEL_OK")
</pallas_src>

<mosaic_0001>
module attributes {stable_mosaic.version = 11 : i64} {
  func.func @_concat_scale_linear_kernel(%arg0: i32, %arg1: i32, %arg2: memref<1x1x5xf32, #tpu.memory_space<vmem>>, %arg3: memref<1x8x32xf32, #tpu.memory_space<vmem>>, %arg4: memref<32x128xf32, #tpu.memory_space<vmem>>, %arg5: memref<1x128xf32, #tpu.memory_space<vmem>>, %arg6: memref<5x128xf32, #tpu.memory_space<vmem>>, %arg7: memref<1x128xf32, #tpu.memory_space<vmem>>, %arg8: memref<5x128xf32, #tpu.memory_space<vmem>>, %arg9: memref<1x8x128xf32, #tpu.memory_space<vmem>>, %arg10: memref<1x128xf32, #tpu.memory_space<vmem>>, %arg11: memref<1x128xf32, #tpu.memory_space<vmem>>) attributes {dimension_semantics = [#tpu.dimension_semantics<parallel>, #tpu.dimension_semantics<arbitrary>], iteration_bounds = array<i64: 2, 1>, scalar_prefetch = 0 : i64, scratch_operands = 2 : i64, tpu.core_type = #tpu.core_type<tc>, window_params = [{transform_indices = @transform_0, window_bounds = array<i64: 1, 1, 5>}, {transform_indices = @transform_1, window_bounds = array<i64: 1, 8, 32>}, {pipeline_mode = #tpu.pipeline_mode<synchronous>, transform_indices = @transform_2, window_bounds = array<i64: 32, 128>}, {pipeline_mode = #tpu.pipeline_mode<synchronous>, transform_indices = @transform_3, window_bounds = array<i64: 1, 128>}, {pipeline_mode = #tpu.pipeline_mode<synchronous>, transform_indices = @transform_4, window_bounds = array<i64: 5, 128>}, {pipeline_mode = #tpu.pipeline_mode<synchronous>, transform_indices = @transform_5, window_bounds = array<i64: 1, 128>}, {pipeline_mode = #tpu.pipeline_mode<synchronous>, transform_indices = @transform_6, window_bounds = array<i64: 5, 128>}, {transform_indices = @transform_7, window_bounds = array<i64: 1, 8, 128>}]} {
    %c0_i32 = arith.constant 0 : i32
    %0 = arith.cmpi eq, %arg1, %c0_i32 : i32
    %1 = arith.extui %0 : i1 to i32
    %c0_i32_0 = arith.constant 0 : i32
    %2 = arith.cmpi ne, %1, %c0_i32_0 : i32
    scf.if %2 {
      %c0_12 = arith.constant 0 : index
      %c0_13 = arith.constant 0 : index
      %c0_14 = arith.constant 0 : index
      %16 = vector.load %arg2[%c0_12, %c0_13, %c0_14] : memref<1x1x5xf32, #tpu.memory_space<vmem>>, vector<1x1x5xf32>
      %17 = vector.shape_cast %16 : vector<1x1x5xf32> to vector<1x5xf32>
      %c0_15 = arith.constant 0 : index
      %c0_16 = arith.constant 0 : index
      %18 = vector.load %arg6[%c0_15, %c0_16] : memref<5x128xf32, #tpu.memory_space<vmem>>, vector<5x128xf32>
      %cst_17 = arith.constant dense<0.000000e+00> : vector<1x128xf32>
      %19 = tpu.matmul %17, %18, %cst_17 {dimension_numbers = #tpu.dot_dimension_numbers<[1], [0], [0], [1], [0, 0, 1, 1], [], []>} : vector<1x5xf32>, vector<5x128xf32>, vector<1x128xf32> -> vector<1x128xf32>
      %c0_18 = arith.constant 0 : index
      %c0_19 = arith.constant 0 : index
      %20 = vector.load %arg7[%c0_18, %c0_19] : memref<1x128xf32, #tpu.memory_space<vmem>>, vector<1x128xf32>
      %21 = arith.addf %19, %20 : vector<1x128xf32>
      %c0_20 = arith.constant 0 : index
      %c0_21 = arith.constant 0 : index
      %22 = vector.load %arg8[%c0_20, %c0_21] : memref<5x128xf32, #tpu.memory_space<vmem>>, vector<5x128xf32>
      %cst_22 = arith.constant dense<0.000000e+00> : vector<1x128xf32>
      %23 = tpu.matmul %17, %22, %cst_22 {dimension_numbers = #tpu.dot_dimension_numbers<[1], [0], [0], [1], [0, 0, 1, 1], [], []>} : vector<1x5xf32>, vector<5x128xf32>, vector<1x128xf32> -> vector<1x128xf32>
      %c0_23 = arith.constant 0 : index
      %c0_24 = arith.constant 0 : index
      %24 = vector.load %arg10[%c0_23, %c0_24] : memref<1x128xf32, #tpu.memory_space<vmem>>, vector<1x128xf32>
      tpu.vector_store %arg10[%c0_23, %c0_24], %21 {strides = array<i32>} : memref<1x128xf32, #tpu.memory_space<vmem>>, vector<1x128xf32>,
      %c0_25 = arith.constant 0 : index
      %c0_26 = arith.constant 0 : index
      %25 = vector.load %arg5[%c0_25, %c0_26] : memref<1x128xf32, #tpu.memory_space<vmem>>, vector<1x128xf32>
      %26 = arith.mulf %25, %21 : vector<1x128xf32>
      %27 = arith.addf %26, %23 : vector<1x128xf32>
      %c0_27 = arith.constant 0 : index
      %c0_28 = arith.constant 0 : index
      %28 = vector.load %arg11[%c0_27, %c0_28] : memref<1x128xf32, #tpu.memory_space<vmem>>, vector<1x128xf32>
      tpu.vector_store %arg11[%c0_27, %c0_28], %27 {strides = array<i32>} : memref<1x128xf32, #tpu.memory_space<vmem>>, vector<1x128xf32>,
    } else {
    }
    %c0 = arith.constant 0 : index
    %c0_1 = arith.constant 0 : index
    %c0_2 = arith.constant 0 : index
    %3 = vector.load %arg3[%c0, %c0_1, %c0_2] : memref<1x8x32xf32, #tpu.memory_space<vmem>>, vector<1x8x32xf32>
    %4 = vector.shape_cast %3 : vector<1x8x32xf32> to vector<8x32xf32>
    %c0_3 = arith.constant 0 : index
    %c0_4 = arith.constant 0 : index
    %5 = vector.load %arg4[%c0_3, %c0_4] : memref<32x128xf32, #tpu.memory_space<vmem>>, vector<32x128xf32>
    %cst = arith.constant dense<0.000000e+00> : vector<8x128xf32>
    %6 = tpu.matmul %4, %5, %cst {dimension_numbers = #tpu.dot_dimension_numbers<[1], [0], [0], [1], [0, 0, 1, 1], [], []>} : vector<8x32xf32>, vector<32x128xf32>, vector<8x128xf32> -> vector<8x128xf32>
    %c0_5 = arith.constant 0 : index
    %c0_6 = arith.constant 0 : index
    %7 = vector.load %arg10[%c0_5, %c0_6] : memref<1x128xf32, #tpu.memory_space<vmem>>, vector<1x128xf32>
    %8 = vector.broadcast %7 : vector<1x128xf32> to vector<8x128xf32>
    %9 = arith.mulf %6, %8 : vector<8x128xf32>
    %c0_7 = arith.constant 0 : index
    %c0_8 = arith.constant 0 : index
    %10 = vector.load %arg11[%c0_7, %c0_8] : memref<1x128xf32, #tpu.memory_space<vmem>>, vector<1x128xf32>
    %11 = vector.broadcast %10 : vector<1x128xf32> to vector<8x128xf32>
    %12 = arith.addf %9, %11 : vector<8x128xf32>
    %c0_9 = arith.constant 0 : index
    %c0_10 = arith.constant 0 : index
    %c0_11 = arith.constant 0 : index
    %13 = vector.load %arg9[%c0_9, %c0_10, %c0_11] : memref<1x8x128xf32, #tpu.memory_space<vmem>>, vector<1x8x128xf32>
    %14 = vector.shape_cast %13 : vector<1x8x128xf32> to vector<8x128xf32>
    %15 = vector.shape_cast %12 : vector<8x128xf32> to vector<1x8x128xf32>
    tpu.vector_store %arg9[%c0_9, %c0_10, %c0_11], %15 {strides = array<i32>} : memref<1x8x128xf32, #tpu.memory_space<vmem>>, vector<1x8x128xf32>,
    return
  }
  func.func @transform_0(%arg0: i32, %arg1: i32) -> (i32, i32, i32) {
    %c0_i32 = arith.constant 0 : i32
    %c0_i32_0 = arith.constant 0 : i32
    %c0_i32_1 = arith.constant 0 : i32
    return %arg0, %c0_i32, %c0_i32_0 : i32, i32, i32
  }
  func.func @transform_1(%arg0: i32, %arg1: i32) -> (i32, i32, i32) {
    %c0_i32 = arith.constant 0 : i32
    %c0_i32_0 = arith.constant 0 : i32
    return %arg0, %arg1, %c0_i32 : i32, i32, i32
  }
  func.func @transform_2(%arg0: i32, %arg1: i32) -> (i32, i32) {
    %c0_i32 = arith.constant 0 : i32
    %c0_i32_0 = arith.constant 0 : i32
    %c0_i32_1 = arith.constant 0 : i32
    return %c0_i32, %c0_i32_0 : i32, i32
  }
  func.func @transform_3(%arg0: i32, %arg1: i32) -> (i32, i32) {
    %c0_i32 = arith.constant 0 : i32
    %c0_i32_0 = arith.constant 0 : i32
    %c0_i32_1 = arith.constant 0 : i32
    return %c0_i32, %c0_i32_0 : i32, i32
  }
  func.func @transform_4(%arg0: i32, %arg1: i32) -> (i32, i32) {
    %c0_i32 = arith.constant 0 : i32
    %c0_i32_0 = arith.constant 0 : i32
    %c0_i32_1 = arith.constant 0 : i32
    return %c0_i32, %c0_i32_0 : i32, i32
  }
  func.func @transform_5(%arg0: i32, %arg1: i32) -> (i32, i32) {
    %c0_i32 = arith.constant 0 : i32
    %c0_i32_0 = arith.constant 0 : i32
    %c0_i32_1 = arith.constant 0 : i32
    return %c0_i32, %c0_i32_0 : i32, i32
  }
  func.func @transform_6(%arg0: i32, %arg1: i32) -> (i32, i32) {
    %c0_i32 = arith.constant 0 : i32
    %c0_i32_0 = arith.constant 0 : i32
    %c0_i32_1 = arith.constant 0 : i32
    return %c0_i32, %c0_i32_0 : i32, i32
  }
  func.func @transform_7(%arg0: i32, %arg1: i32) -> (i32, i32, i32) {
    %c0_i32 = arith.constant 0 : i32
    %c0_i32_0 = arith.constant 0 : i32
    return %arg0, %arg1, %c0_i32 : i32, i32, i32
  }
}

</mosaic_0001>

<llo_original>
// kernel: tpu_custom_call.1
$region0: #{tpu_custom_call.1}
  #allocation0 [shape = 'u32[]', space=smem, size = 0x4, offset = 0x4, fixed_abs, tag = 'smem constant byte address 0x4 - core index']
  #allocation1 [shape = 'u32[144,128]{1,0:T(1,128)}', space=vmem, size = 0x12000, scoped, tag = 'internal scratch']
  #allocation2 [shape = 'f32[1,128]{1,0:T(1,128)}', space=vmem, size = 0x200, scoped, tag = 'scratch operand']
  #allocation3 [shape = 'f32[1,128]{1,0:T(1,128)}', space=vmem, size = 0x200, scoped, tag = 'scratch operand']
  %s0 = inlined_call_operand.hbm [shape: f32[2,1,5], index: 0, kind: input, shape index: {}]
  %s1 = inlined_call_operand.hbm [shape: f32[2,8,32], index: 1, kind: input, shape index: {}]
  %s2 = inlined_call_operand.hbm [shape: f32[32,128], index: 2, kind: input, shape index: {}]
  %s3 = inlined_call_operand.vmem [shape: f32[1,128], index: 3, kind: input, shape index: {}]
  %s4 = inlined_call_operand.vmem [shape: f32[5,128], index: 4, kind: input, shape index: {}]
  %s5 = inlined_call_operand.vmem [shape: f32[1,128], index: 5, kind: input, shape index: {}]
  %s6 = inlined_call_operand.vmem [shape: f32[5,128], index: 6, kind: input, shape index: {}]
  %s7 = inlined_call_operand.hbm [shape: f32[2,8,128], index: 7, kind: output, shape index: {}]
  %s8 = sld [smem:[#allocation0]]
  $region77: #{tpu_custom_call.1} parent=0
    _
  %s10 = ssub.s32 1, %s8
  %s11 = scalar_select 0, %s10, %s8
  $region1: #{tpu_custom_call.1} parent=0
    #allocation4 [shape = 'u8[1024]{0}', space=vmem, size = 0x400, scoped, tag = 'input window, operand 0']
    #allocation5 [shape = 's32[2]{0}', space=sflag, size = 0x8, scoped, tag = 'scoped memory for tpu_custom_call.1']
    #allocation6 [shape = 's32[2]{0}', space=sflag, size = 0x8, scoped, tag = 'scoped memory for tpu_custom_call.1']
    #allocation7 [shape = 'u8[8192]{0}', space=vmem, size = 0x2000, scoped, tag = 'input window, operand 1']
    #allocation8 [shape = 's32[2]{0}', space=sflag, size = 0x8, scoped, tag = 'scoped memory for tpu_custom_call.1']
    #allocation9 [shape = 'u8[16384]{0}', space=vmem, size = 0x4000, scoped, tag = 'input window, operand 2, single buffered']
    #allocation10 [shape = 'u8[8192]{0}', space=vmem, size = 0x2000, scoped, tag = 'output window, operand 0']
    %12 = vsyncpa [#allocation5], 0
    %s13 = scalar_lea.sflag [#allocation5], 1
    %14 = vsyncpa %s13, 0
    %15 = vsyncpa [#allocation8], 0
    %s16 = scalar_lea.sflag [#allocation8], 1
    %17 = vsyncpa %s16, 0
    %18 = vsyncpa [#allocation6], 0
    %s19 = scalar_lea.sflag [#allocation6], 1
    %20 = vsyncpa %s19, 0
    loop: start=0, step=1, limit=4
    $region2: #{tpu_custom_call.1} parent=1 // loop_pre_header
      _
    $region3: #{tpu_custom_call.1} parent=1 // loop_header
      %s22 = sphi 0, %s26
      %p23 = scmp.ge.s32.totalorder %s22, 4
      %s29 = sphi 0, %s41
      %s30 = sphi 0, %s37
      %s31 = sphi 0, %s29
      %s32 = sphi 0, %s30
      %s33 = sphi 0, %s31
      %s34 = sphi 0, %s32
      %s44 = sphi 0, %s46
      %s47 = sphi 0, %s44
      %s48 = sphi 0, %s47
      %s64 = sphi 0, %s48
      %s72 = sphi 0, %s74
      %s75 = sphi 0, %s72
      %s76 = sphi 0, %s75
      %s92 = sphi 0, %s76
      %s96 = sphi 0, %s96
      %s98 = sphi 0, %s96
      %s99 = sphi 0, %s98
      %s113 = sphi 0, %s99
      %s117 = sphi 0, %s117
      %s119 = sphi 0, %s117
      %s120 = sphi 0, %s119
      %s134 = sphi 0, %s120
      %s138 = sphi 0, %s138
      %s140 = sphi 0, %s138
      %s141 = sphi 0, %s140
      %s155 = sphi 0, %s141
      %s159 = sphi 0, %s159
      %s161 = sphi 0, %s159
      %s162 = sphi 0, %s161
      %s176 = sphi 0, %s162
      %s180 = sphi 0, %s180
      %s182 = sphi 0, %s180
      %s183 = sphi 0, %s182
      %s197 = sphi 0, %s183
      %s205 = sphi 0, %s207
      %s208 = sphi 0, %s205
      %s209 = sphi 0, %s208
      %s225 = sphi 0, %s209
    $region4: #{tpu_custom_call.1} parent=1 // loop_header_branch
      %25 = sbr.rel (%p23) target = $region8
    $region5: #{tpu_custom_call.1} parent=1 // loop_body
      %s27 = ssub.s32 %s22, 1
      %s28 = ssub.s32 %s22, 2
      %s35 = sadd.s32 1, %s30
      %p36 = scmp.ge.s32.totalorder %s35, 1
      %s37 = scalar_select %p36, 0, %s35
      %s38 = sadd.s32 1, %s29
      %s39 = scalar_select %p36, %s38, %s29
      %p40 = scmp.ge.s32.totalorder %s39, 2
      %s41 = scalar_select %p40, 0, %s39
      %s42 = ssub.s32 %s29, %s41
      %p43 = scmp.eq.s32.totalorder %s42, 0
      %s45 = sadd.s32 %s44, 1
      %s46 = scalar_select %p43, %s44, %s45
      %p49 = pneg %p43
      %p50 = scmp.eq.s32.totalorder %s22, 1
      %p51 = por %p49, %p50
      %p52 = scmp.ne.s32.totalorder %s44, %s47
      %p53 = scmp.eq.s32.totalorder %s22, 0
      %p54 = por %p52, %p53
      %p55 = scmp.ne.s32.totalorder %s44, %s47
      %p56 = scmp.eq.s32.totalorder %s27, 1
      %p57 = por %p55, %p56
      %p58 = scmp.ne.s32.totalorder %s47, %s48
      %p59 = scmp.eq.s32.totalorder %s27, 0
      %p60 = por %p58, %p59
      %p61 = scmp.ne.s32.totalorder %s47, %s48
      %p62 = scmp.eq.s32.totalorder %s28, 1
      %p63 = por %p61, %p62
      %p65 = scmp.ne.s32.totalorder %s48, %s64
      %p66 = scmp.eq.s32.totalorder %s28, 0
      %p67 = por %p65, %p66
      %s68 = ssub.s32 %s29, %s41
      %s69 = ssub.s32 %s30, %s37
      %s70 = sor.u32 %s68, %s69
      %p71 = scmp.eq.s32.totalorder %s70, 0
      %s73 = sadd.s32 %s72, 1
      %s74 = scalar_select %p71, %s72, %s73
      %p77 = pneg %p71
      %p78 = scmp.eq.s32.totalorder %s22, 1
      %p79 = por %p77, %p78
      %p80 = scmp.ne.s32.totalorder %s72, %s75
      %p81 = scmp.eq.s32.totalorder %s22, 0
      %p82 = por %p80, %p81
      %p83 = scmp.ne.s32.totalorder %s72, %s75
      %p84 = scmp.eq.s32.totalorder %s27, 1
      %p85 = por %p83, %p84
      %p86 = scmp.ne.s32.totalorder %s75, %s76
      %p87 = scmp.eq.s32.totalorder %s27, 0
      %p88 = por %p86, %p87
      %p89 = scmp.ne.s32.totalorder %s75, %s76
      %p90 = scmp.eq.s32.totalorder %s28, 1
      %p91 = por %p89, %p90
      %p93 = scmp.ne.s32.totalorder %s76, %s92
      %p94 = scmp.eq.s32.totalorder %s28, 0
      %p95 = por %p93, %p94
      %s97 = sadd.s32 %s96, 1
      %p100 = scmp.eq.s32.totalorder %s22, 1
      %p101 = scmp.ne.s32.totalorder %s96, %s98
      %p102 = scmp.eq.s32.totalorder %s22, 0
      %p103 = por %p101, %p102
      %p104 = scmp.ne.s32.totalorder %s96, %s98
      %p105 = scmp.eq.s32.totalorder %s27, 1
      %p106 = por %p104, %p105
      %p107 = scmp.ne.s32.totalorder %s98, %s99
      %p108 = scmp.eq.s32.totalorder %s27, 0
      %p109 = por %p107, %p108
      %p110 = scmp.ne.s32.totalorder %s98, %s99
      %p111 = scmp.eq.s32.totalorder %s28, 1
      %p112 = por %p110, %p111
      %p114 = scmp.ne.s32.totalorder %s99, %s113
      %p115 = scmp.eq.s32.totalorder %s28, 0
      %p116 = por %p114, %p115
      %s118 = sadd.s32 %s117, 1
      %p121 = scmp.eq.s32.totalorder %s22, 1
      %p122 = scmp.ne.s32.totalorder %s117, %s119
      %p123 = scmp.eq.s32.totalorder %s22, 0
      %p124 = por %p122, %p123
      %p125 = scmp.ne.s32.totalorder %s117, %s119
      %p126 = scmp.eq.s32.totalorder %s27, 1
      %p127 = por %p125, %p126
      %p128 = scmp.ne.s32.totalorder %s119, %s120
      %p129 = scmp.eq.s32.totalorder %s27, 0
      %p130 = por %p128, %p129
      %p131 = scmp.ne.s32.totalorder %s119, %s120
      %p132 = scmp.eq.s32.totalorder %s28, 1
      %p133 = por %p131, %p132
      %p135 = scmp.ne.s32.totalorder %s120, %s134
      %p136 = scmp.eq.s32.totalorder %s28, 0
      %p137 = por %p135, %p136
      %s139 = sadd.s32 %s138, 1
      %p142 = scmp.eq.s32.totalorder %s22, 1
      %p143 = scmp.ne.s32.totalorder %s138, %s140
      %p144 = scmp.eq.s32.totalorder %s22, 0
      %p145 = por %p143, %p144
      %p146 = scmp.ne.s32.totalorder %s138, %s140
      %p147 = scmp.eq.s32.totalorder %s27, 1
      %p148 = por %p146, %p147
      %p149 = scmp.ne.s32.totalorder %s140, %s141
      %p150 = scmp.eq.s32.totalorder %s27, 0
      %p151 = por %p149, %p150
      %p152 = scmp.ne.s32.totalorder %s140, %s141
      %p153 = scmp.eq.s32.totalorder %s28, 1
      %p154 = por %p152, %p153
      %p156 = scmp.ne.s32.totalorder %s141, %s155
      %p157 = scmp.eq.s32.totalorder %s28, 0
      %p158 = por %p156, %p157
      %s160 = sadd.s32 %s159, 1
      %p163 = scmp.eq.s32.totalorder %s22, 1
      %p164 = scmp.ne.s32.totalorder %s159, %s161
      %p165 = scmp.eq.s32.totalorder %s22, 0
      %p166 = por %p164, %p165
      %p167 = scmp.ne.s32.totalorder %s159, %s161
      %p168 = scmp.eq.s32.totalorder %s27, 1
      %p169 = por %p167, %p168
      %p170 = scmp.ne.s32.totalorder %s161, %s162
      %p171 = scmp.eq.s32.totalorder %s27, 0
      %p172 = por %p170, %p171
      %p173 = scmp.ne.s32.totalorder %s161, %s162
      %p174 = scmp.eq.s32.totalorder %s28, 1
      %p175 = por %p173, %p174
      %p177 = scmp.ne.s32.totalorder %s162, %s176
      %p178 = scmp.eq.s32.totalorder %s28, 0
      %p179 = por %p177, %p178
      %s181 = sadd.s32 %s180, 1
      %p184 = scmp.eq.s32.totalorder %s22, 1
      %p185 = scmp.ne.s32.totalorder %s180, %s182
      %p186 = scmp.eq.s32.totalorder %s22, 0
      %p187 = por %p185, %p186
      %p188 = scmp.ne.s32.totalorder %s180, %s182
      %p189 = scmp.eq.s32.totalorder %s27, 1
      %p190 = por %p188, %p189
      %p191 = scmp.ne.s32.totalorder %s182, %s183
      %p192 = scmp.eq.s32.totalorder %s27, 0
      %p193 = por %p191, %p192
      %p194 = scmp.ne.s32.totalorder %s182, %s183
      %p195 = scmp.eq.s32.totalorder %s28, 1
      %p196 = por %p194, %p195
      %p198 = scmp.ne.s32.totalorder %s183, %s197
      %p199 = scmp.eq.s32.totalorder %s28, 0
      %p200 = por %p198, %p199
      %s201 = ssub.s32 %s29, %s41
      %s202 = ssub.s32 %s30, %s37
      %s203 = sor.u32 %s201, %s202
      %p204 = scmp.eq.s32.totalorder %s203, 0
      %s206 = sadd.s32 %s205, 1
      %s207 = scalar_select %p204, %s205, %s206
      %p210 = pneg %p204
      %p211 = scmp.eq.s32.totalorder %s22, 1
      %p212 = por %p210, %p211
      %p213 = scmp.ne.s32.totalorder %s205, %s208
      %p214 = scmp.eq.s32.totalorder %s22, 0
      %p215 = por %p213, %p214
      %p216 = scmp.ne.s32.totalorder %s205, %s208
      %p217 = scmp.eq.s32.totalorder %s27, 1
      %p218 = por %p216, %p217
      %p219 = scmp.ne.s32.totalorder %s208, %s209
      %p220 = scmp.eq.s32.totalorder %s27, 0
      %p221 = por %p219, %p220
      %p222 = scmp.ne.s32.totalorder %s208, %s209
      %p223 = scmp.eq.s32.totalorder %s28, 1
      %p224 = por %p222, %p223
      %p226 = scmp.ne.s32.totalorder %s209, %s225
      %p227 = scmp.eq.s32.totalorder %s28, 0
      %p228 = por %p226, %p227
      %p229 = scmp.le.s32.totalorder 1, %s22
      %p230 = scmp.lt.s32.totalorder %s22, 3
      %p231 = pnand %p229, %p230
      %p232 = pneg %p231
      // Predicated region
      $region9: #{tpu_custom_call.1} parent=5 // pred_check
        _
      $region10: #{tpu_custom_call.1} parent=5 // pred_check_branch
        %234 = sbr.rel (%p231) target = $region12
      $region11: #{tpu_custom_call.1} parent=5 // pred_region
        %s235 = ssub.s32 %s22, 1
        // Predicated region
        $region13: #{tpu_custom_call.1} parent=11 // pred_check
          %p236 = pneg %p109
        $region14: #{tpu_custom_call.1} parent=11 // pred_check_branch
          %238 = sbr.rel (%p236) target = $region16
        $region15: #{tpu_custom_call.1} parent=11 // pred_region
          %s240 = ssub.s32 512, 512
          %241 = vsyncadd [#allocation8], %s240
          %s242 = sshll.u32 [#allocation9], 4
          %s243 = int_to_ptr.vmem [resolvable:$true] %s242
          %248 = dma.hbm_to_vmem [thread:$0]  %s2, 512, %s243, [#allocation8], 128, 128, 8
        $region16: #{tpu_custom_call.1} parent=11 // pred_fallthru
          _
        // Predicated region
        $region17: #{tpu_custom_call.1} parent=11 // pred_check
          %p249 = pneg %p130
        $region18: #{tpu_custom_call.1} parent=11 // pred_check_branch
          %251 = sbr.rel (%p249) target = $region20
        $region19: #{tpu_custom_call.1} parent=11 // pred_region
          _
        $region20: #{tpu_custom_call.1} parent=11 // pred_fallthru
          _
        // Predicated region
        $region21: #{tpu_custom_call.1} parent=11 // pred_check
          %p252 = pneg %p151
        $region22: #{tpu_custom_call.1} parent=11 // pred_check_branch
          %254 = sbr.rel (%p252) target = $region24
        $region23: #{tpu_custom_call.1} parent=11 // pred_region
          _
        $region24: #{tpu_custom_call.1} parent=11 // pred_fallthru
          _
        // Predicated region
        $region25: #{tpu_custom_call.1} parent=11 // pred_check
          %p255 = pneg %p172
        $region26: #{tpu_custom_call.1} parent=11 // pred_check_branch
          %257 = sbr.rel (%p255) target = $region28
        $region27: #{tpu_custom_call.1} parent=11 // pred_region
          _
        $region28: #{tpu_custom_call.1} parent=11 // pred_fallthru
          _
        // Predicated region
        $region29: #{tpu_custom_call.1} parent=11 // pred_check
          %p258 = pneg %p193
        $region30: #{tpu_custom_call.1} parent=11 // pred_check_branch
          %260 = sbr.rel (%p258) target = $region32
        $region31: #{tpu_custom_call.1} parent=11 // pred_region
          _
        $region32: #{tpu_custom_call.1} parent=11 // pred_fallthru
          _
      $region12: #{tpu_custom_call.1} parent=5 // pred_fallthru
        _
      %p261 = scmp.lt.s32.totalorder %s22, 2
      // Predicated region
      $region33: #{tpu_custom_call.1} parent=5 // pred_check
        %p262 = pneg %p261
      $region34: #{tpu_custom_call.1} parent=5 // pred_check_branch
        %264 = sbr.rel (%p262) target = $region36
      $region35: #{tpu_custom_call.1} parent=5 // pred_region
        // Predicated region
        $region37: #{tpu_custom_call.1} parent=35 // pred_check
          %p265 = pneg %p54
        $region38: #{tpu_custom_call.1} parent=35 // pred_check_branch
          %267 = sbr.rel (%p265) target = $region40
        $region39: #{tpu_custom_call.1} parent=35 // pred_region
          %s268 = sand.u32 %s44, 1
          %s269 = scalar_lea.sflag [#allocation5], %s268
          %s270 = sand.u32 %s44, 1
          %s271 = scalar_lea.vmem [#allocation4], %s270
          %s273 = ssub.s32 16, 16
          %274 = vsyncadd %s269, %s273
          %s275 = smul.addr %s29, 16
          %s276 = scalar_lea.hbm %s0, %s275
          %s278 = sshll.u32 %s271, 4
          %s279 = int_to_ptr.vmem [resolvable:$true] %s278
          %281 = dma.hbm_to_vmem [thread:$0]  %s276, 16, %s279, %s269
        $region40: #{tpu_custom_call.1} parent=35 // pred_fallthru
          _
        // Predicated region
        $region41: #{tpu_custom_call.1} parent=35 // pred_check
          %p282 = pneg %p82
        $region42: #{tpu_custom_call.1} parent=35 // pred_check_branch
          %284 = sbr.rel (%p282) target = $region44
        $region43: #{tpu_custom_call.1} parent=35 // pred_region
          %s285 = sand.u32 %s22, 1
          %s286 = scalar_lea.sflag [#allocation8], %s285
          %s287 = sand.u32 %s72, 1
          %s288 = smul.addr %s287, 8
          %s289 = scalar_lea.vmem [#allocation7], %s288
          %s291 = ssub.s32 128, 128
          %292 = vsyncadd %s286, %s291
          %s293 = sadd.s32 %s30, %s29
          %s294 = smul.addr %s293, 128
          %s295 = scalar_lea.hbm %s1, %s294
          %s297 = sshll.u32 %s289, 4
          %s298 = int_to_ptr.vmem [resolvable:$true] %s297
          %300 = dma.hbm_to_vmem [thread:$0]  %s295, 128, %s298, %s286
        $region44: #{tpu_custom_call.1} parent=35 // pred_fallthru
          _
      $region36: #{tpu_custom_call.1} parent=5 // pred_fallthru
        _
      %p301 = scmp.le.s32.totalorder 1, %s22
      %p302 = scmp.lt.s32.totalorder %s22, 3
      %p303 = pnand %p301, %p302
      %p304 = pneg %p303
      // Predicated region
      $region45: #{tpu_custom_call.1} parent=5 // pred_check
        _
      $region46: #{tpu_custom_call.1} parent=5 // pred_check_branch
        %306 = sbr.rel (%p303) target = $region48
      $region47: #{tpu_custom_call.1} parent=5 // pred_region
        %s307 = ssub.s32 %s22, 1
        %s308 = sand.u32 %s47, 1
        %s309 = scalar_lea.sflag [#allocation5], %s308
        %s310 = sand.u32 %s47, 1
        %s311 = scalar_lea.vmem [#allocation4], %s310
        // Predicated region
        $region49: #{tpu_custom_call.1} parent=47 // pred_check
          %p312 = pneg %p60
        $region50: #{tpu_custom_call.1} parent=47 // pred_check_branch
          %314 = sbr.rel (%p312) target = $region52
        $region51: #{tpu_custom_call.1} parent=47 // pred_region
          %315 = dma.done %s309, 16
        $region52: #{tpu_custom_call.1} parent=47 // pred_fallthru
          _
        %s316 = sand.u32 %s27, 1
        %s317 = scalar_lea.sflag [#allocation8], %s316
        %s318 = sand.u32 %s75, 1
        %s319 = smul.addr %s318, 8
        %s320 = scalar_lea.vmem [#allocation7], %s319
        // Predicated region
        $region53: #{tpu_custom_call.1} parent=47 // pred_check
          %p321 = pneg %p88
        $region54: #{tpu_custom_call.1} parent=47 // pred_check_branch
          %323 = sbr.rel (%p321) target = $region56
        $region55: #{tpu_custom_call.1} parent=47 // pred_region
          %324 = dma.done %s317, 128
        $region56: #{tpu_custom_call.1} parent=47 // pred_fallthru
          _
        // Predicated region
        $region57: #{tpu_custom_call.1} parent=47 // pred_check
          %p325 = pneg %p109
        $region58: #{tpu_custom_call.1} parent=47 // pred_check_branch
          %327 = sbr.rel (%p325) target = $region60
        $region59: #{tpu_custom_call.1} parent=47 // pred_region
          %328 = dma.done [#allocation8], 512
        $region60: #{tpu_custom_call.1} parent=47 // pred_fallthru
          _
        %s329 = sand.u32 %s47, 1
        %s330 = scalar_lea.sflag [#allocation5], %s329
        %s331 = sand.u32 %s47, 1
        %s332 = scalar_lea.vmem [#allocation4], %s331
        %p333 = pneg %p60
        %p334 = pneg %p57
        %s335 = sand.u32 %s27, 1
        %s336 = scalar_lea.sflag [#allocation8], %s335
        %s337 = sand.u32 %s75, 1
        %s338 = smul.addr %s337, 8
        %s339 = scalar_lea.vmem [#allocation7], %s338
        %p340 = pneg %p88
        %p341 = pneg %p85
        %p342 = pneg %p109
        %p343 = pneg %p106
        %p344 = pneg %p130
        %p345 = pneg %p127
        %p346 = pneg %p151
        %p347 = pneg %p148
        %p348 = pneg %p172
        %p349 = pneg %p169
        %p350 = pneg %p193
        %p351 = pneg %p190
        %p352 = pneg %p221
        %p353 = pneg %p218
        %s354 = sand.u32 %s208, 1
        %s355 = scalar_lea.sflag [#allocation6], %s354
        %s356 = sand.u32 %s208, 1
        %s357 = smul.addr %s356, 8
        %s358 = scalar_lea.vmem [#allocation10], %s357
        %p359 = scmp.eq.s32.totalorder %s32, 0
        // Predicated region
        $region61: #{tpu_custom_call.1} parent=47 // pred_check
          %p360 = pneg %p359
        $region62: #{tpu_custom_call.1} parent=47 // pred_check_branch
          %362 = sbr.rel (%p360) target = $region64
        $region63: #{tpu_custom_call.1} parent=47 // pred_region
          %v363 = vld [vmem:[%s311] sm:$0x1]
          %v364 = vld [vmem:[%s4] sm:$0x1f]
          %v365 = vld [vmem:[%s5] sm:$0x1]
          %vm366 = vcmask 39936
          %v368 = vsel %vm366, %v363, 0
          %vm370 = vcmask 1044480
          %v372 = vsel %vm370, %v364, 0
          %374 = vmatprep.subr.mxu0 0.0
          %375 = vmatpush1.msra.mxu0 %v372
          %376 = vmatprep.subr.mxu0 0.0
          %377 = vmatpush1.msra.mxu0 0.0
          %378 = vmatprep.subr.mxu0 0.0
          %379 = vmatpush1.msra.mxu0 0.0
          %380 = vmatprep.subr.mxu0 0.0
          %381 = vmatpush1.msra.mxu0 0.0
          %382 = vmatprep.subr.mxu0 0.0
          %383 = vmatpush1.msra.mxu0 0.0
          %384 = vmatprep.subr.mxu0 0.0
          %385 = vmatpush1.msra.mxu0 0.0
          %386 = vmatprep.subr.mxu0 0.0
          %387 = vmatpush1.msra.mxu0 0.0
          %388 = vmatprep.subr.mxu0 0.0
          %389 = vmatpush1.msra.mxu0 0.0
          %390 = vmatprep.subr.mxu0 0.0
          %391 = vmatpush1.msra.mxu0 0.0
          %392 = vmatprep.subr.mxu0 0.0
          %393 = vmatpush1.msra.mxu0 0.0
          %394 = vmatprep.subr.mxu0 0.0
          %395 = vmatpush1.msra.mxu0 0.0
          %396 = vmatprep.subr.mxu0 0.0
          %397 = vmatpush1.msra.mxu0 0.0
          %398 = vmatprep.subr.mxu0 0.0
          %399 = vmatpush1.msra.mxu0 0.0
          %400 = vmatprep.subr.mxu0 0.0
          %401 = vmatpush1.msra.mxu0 0.0
          %402 = vmatprep.subr.mxu0 0.0
          %403 = vmatpush1.msra.mxu0 0.0
          %404 = vmatprep.subr.mxu0 0.0
          %405 = vmatpush1.msra.mxu0 0.0
          %406 = vmatprep.subr.mxu0 0.0
          %407 = vmatpush1.msra.mxu0 0.0
          %408 = vmatprep.subr.mxu0 0.0
          %409 = vmatpush1.msra.mxu0 0.0
          %410 = vmatprep.subr.mxu0 0.0
          %411 = vmatpush1.msra.mxu0 0.0
          %412 = vmatprep.subr.mxu0 0.0
          %413 = vmatpush1.msra.mxu0 0.0
          %414 = vmatprep.subr.mxu0 0.0
          %415 = vmatpush1.msra.mxu0 0.0
          %416 = vmatprep.subr.mxu0 0.0
          %417 = vmatpush1.msra.mxu0 0.0
          %418 = vmatprep.subr.mxu0 0.0
          %419 = vmatpush1.msra.mxu0 0.0
          %420 = vmatprep.subr.mxu0 0.0
          %421 = vmatpush1.msra.mxu0 0.0
          %422 = vmatprep.subr.mxu0 0.0
          %423 = vmatpush1.msra.mxu0 0.0
          %424 = vmatprep.subr.mxu0 0.0
          %425 = vmatpush1.msra.mxu0 0.0
          %426 = vmatprep.subr.mxu0 0.0
          %427 = vmatpush1.msra.mxu0 0.0
          %428 = vmatprep.subr.mxu0 0.0
          %429 = vmatpush1.msra.mxu0 0.0
          %430 = vmatprep.subr.mxu0 0.0
          %431 = vmatpush1.msra.mxu0 0.0
          %432 = vmatprep.subr.mxu0 0.0
          %433 = vmatpush1.msra.mxu0 0.0
          %434 = vmatprep.subr.mxu0 0.0
          %435 = vmatpush1.msra.mxu0 0.0
          %436 = vmatprep.subr.mxu0 0.0
          %437 = vmatpush1.msra.mxu0 0.0
          %438 = vmatprep.mubr.f32.mxu0 0.0
          %439 = vmatmul.mubr.f32.gmra.mrb[0].mxu0 %v368
          %v440 = vpop.f32.mrb[0].mxu0
          %v441 = vadd.f32 %v365, %v440
          %v442 = vpop.f32.mrb[0].mxu0
          %443 = vdwg.mxu0
          %v444 = vld [vmem:[%s6] sm:$0x1f]
          %v446 = vsel %vm370, %v444, 0
          %448 = vmatprep.subr.mxu0 0.0
          %449 = vmatpush1.msra.mxu0 %v446
          %450 = vmatprep.subr.mxu0 0.0
          %451 = vmatpush1.msra.mxu0 0.0
          %452 = vmatprep.subr.mxu0 0.0
          %453 = vmatpush1.msra.mxu0 0.0
          %454 = vmatprep.subr.mxu0 0.0
          %455 = vmatpush1.msra.mxu0 0.0
          %456 = vmatprep.subr.mxu0 0.0
          %457 = vmatpush1.msra.mxu0 0.0
          %458 = vmatprep.subr.mxu0 0.0
          %459 = vmatpush1.msra.mxu0 0.0
          %460 = vmatprep.subr.mxu0 0.0
          %461 = vmatpush1.msra.mxu0 0.0
          %462 = vmatprep.subr.mxu0 0.0
          %463 = vmatpush1.msra.mxu0 0.0
          %464 = vmatprep.subr.mxu0 0.0
          %465 = vmatpush1.msra.mxu0 0.0
          %466 = vmatprep.subr.mxu0 0.0
          %467 = vmatpush1.msra.mxu0 0.0
          %468 = vmatprep.subr.mxu0 0.0
          %469 = vmatpush1.msra.mxu0 0.0
          %470 = vmatprep.subr.mxu0 0.0
          %471 = vmatpush1.msra.mxu0 0.0
          %472 = vmatprep.subr.mxu0 0.0
          %473 = vmatpush1.msra.mxu0 0.0
          %474 = vmatprep.subr.mxu0 0.0
          %475 = vmatpush1.msra.mxu0 0.0
          %476 = vmatprep.subr.mxu0 0.0
          %477 = vmatpush1.msra.mxu0 0.0
          %478 = vmatprep.subr.mxu0 0.0
          %479 = vmatpush1.msra.mxu0 0.0
          %480 = vmatprep.subr.mxu0 0.0
          %481 = vmatpush1.msra.mxu0 0.0
          %482 = vmatprep.subr.mxu0 0.0
          %483 = vmatpush1.msra.mxu0 0.0
          %484 = vmatprep.subr.mxu0 0.0
          %485 = vmatpush1.msra.mxu0 0.0
          %486 = vmatprep.subr.mxu0 0.0
          %487 = vmatpush1.msra.mxu0 0.0
          %488 = vmatprep.subr.mxu0 0.0
          %489 = vmatpush1.msra.mxu0 0.0
          %490 = vmatprep.subr.mxu0 0.0
          %491 = vmatpush1.msra.mxu0 0.0
          %492 = vmatprep.subr.mxu0 0.0
          %493 = vmatpush1.msra.mxu0 0.0
          %494 = vmatprep.subr.mxu0 0.0
          %495 = vmatpush1.msra.mxu0 0.0
          %496 = vmatprep.subr.mxu0 0.0
          %497 = vmatpush1.msra.mxu0 0.0
          %498 = vmatprep.subr.mxu0 0.0
          %499 = vmatpush1.msra.mxu0 0.0
          %500 = vmatprep.subr.mxu0 0.0
          %501 = vmatpush1.msra.mxu0 0.0
          %502 = vmatprep.subr.mxu0 0.0
          %503 = vmatpush1.msra.mxu0 0.0
          %504 = vmatprep.subr.mxu0 0.0
          %505 = vmatpush1.msra.mxu0 0.0
          %506 = vmatprep.subr.mxu0 0.0
          %507 = vmatpush1.msra.mxu0 0.0
          %508 = vmatprep.subr.mxu0 0.0
          %509 = vmatpush1.msra.mxu0 0.0
          %510 = vmatprep.subr.mxu0 0.0
          %511 = vmatpush1.msra.mxu0 0.0
          %512 = vmatprep.mubr.f32.mxu0 0.0
          %513 = vmatmul.mubr.f32.gmra.mrb[0].mxu0 %v368
          %v514 = vpop.f32.mrb[0].mxu0
          %v515 = vadd.f32 0.0, %v514
          %v516 = vpop.f32.mrb[0].mxu0
          %517 = vdwg.mxu0
          %518 = vst [vmem:[#allocation2] sm:$0x1] %v441
          %v519 = vld [vmem:[%s3] sm:$0x1]
          %v520 = vmul.f32 %v519, %v441
          %v521 = vadd.f32 %v520, %v515
          %522 = vst [vmem:[#allocation3] sm:$0x1] %v521
        $region64: #{tpu_custom_call.1} parent=47 // pred_fallthru
          _
        %v523 = vld [vmem:[%s320] sm:$0xff]
        %v524 = vld [vmem:[#allocation9] sm:$0xff]
        %v525 = vld [vmem:[#allocation9 + $0x8] sm:$0xff]
        %v526 = vld [vmem:[#allocation9 + $0x10] sm:$0xff]
        %v527 = vld [vmem:[#allocation9 + $0x18] sm:$0xff]
        %vm528 = vcmask 261120
        %v530 = vsel %vm528, %v523, 0
        %532 = vmatprep.subr.mxu0 0.0
        %533 = vmatpush1.msra.mxu0 %v524
        %534 = vmatprep.subr.mxu0 0.0
        %535 = vmatpush1.msra.mxu0 %v525
        %536 = vmatprep.subr.mxu0 0.0
        %537 = vmatpush1.msra.mxu0 %v526
        %538 = vmatprep.subr.mxu0 0.0
        %539 = vmatpush1.msra.mxu0 %v527
        %540 = vmatprep.subr.mxu0 0.0
        %541 = vmatpush1.msra.mxu0 0.0
        %542 = vmatprep.subr.mxu0 0.0
        %543 = vmatpush1.msra.mxu0 0.0
        %544 = vmatprep.subr.mxu0 0.0
        %545 = vmatpush1.msra.mxu0 0.0
        %546 = vmatprep.subr.mxu0 0.0
        %547 = vmatpush1.msra.mxu0 0.0
        %548 = vmatprep.subr.mxu0 0.0
        %549 = vmatpush1.msra.mxu0 0.0
        %550 = vmatprep.subr.mxu0 0.0
        %551 = vmatpush1.msra.mxu0 0.0
        %552 = vmatprep.subr.mxu0 0.0
        %553 = vmatpush1.msra.mxu0 0.0
        %554 = vmatprep.subr.mxu0 0.0
        %555 = vmatpush1.msra.mxu0 0.0
        %556 = vmatprep.subr.mxu0 0.0
        %557 = vmatpush1.msra.mxu0 0.0
        %558 = vmatprep.subr.mxu0 0.0
        %559 = vmatpush1.msra.mxu0 0.0
        %560 = vmatprep.subr.mxu0 0.0
        %561 = vmatpush1.msra.mxu0 0.0
        %562 = vmatprep.subr.mxu0 0.0
        %563 = vmatpush1.msra.mxu0 0.0
        %564 = vmatprep.subr.mxu0 0.0
        %565 = vmatpush1.msra.mxu0 0.0
        %566 = vmatprep.subr.mxu0 0.0
        %567 = vmatpush1.msra.mxu0 0.0
        %568 = vmatprep.subr.mxu0 0.0
        %569 = vmatpush1.msra.mxu0 0.0
        %570 = vmatprep.subr.mxu0 0.0
        %571 = vmatpush1.msra.mxu0 0.0
        %572 = vmatprep.subr.mxu0 0.0
        %573 = vmatpush1.msra.mxu0 0.0
        %574 = vmatprep.subr.mxu0 0.0
        %575 = vmatpush1.msra.mxu0 0.0
        %576 = vmatprep.subr.mxu0 0.0
        %577 = vmatpush1.msra.mxu0 0.0
        %578 = vmatprep.subr.mxu0 0.0
        %579 = vmatpush1.msra.mxu0 0.0
        %580 = vmatprep.subr.mxu0 0.0
        %581 = vmatpush1.msra.mxu0 0.0
        %582 = vmatprep.subr.mxu0 0.0
        %583 = vmatpush1.msra.mxu0 0.0
        %584 = vmatprep.subr.mxu0 0.0
        %585 = vmatpush1.msra.mxu0 0.0
        %586 = vmatprep.subr.mxu0 0.0
        %587 = vmatpush1.msra.mxu0 0.0
        %588 = vmatprep.subr.mxu0 0.0
        %589 = vmatpush1.msra.mxu0 0.0
        %590 = vmatprep.subr.mxu0 0.0
        %591 = vmatpush1.msra.mxu0 0.0
        %592 = vmatprep.subr.mxu0 0.0
        %593 = vmatpush1.msra.mxu0 0.0
        %594 = vmatprep.subr.mxu0 0.0
        %595 = vmatpush1.msra.mxu0 0.0
        %596 = vmatprep.mubr.f32.mxu0 0.0
        %597 = vmatmul.mubr.f32.gmra.mrb[0].mxu0 %v530
        %v598 = vpop.f32.mrb[0].mxu0
        %v599 = vadd.f32 0.0, %v598
        %v600 = vpop.f32.mrb[0].mxu0
        %601 = vdwg.mxu0
        %v602 = vld [vmem:[#allocation2] sm:$0x1]
        %v604 = vlaneseq
        %v605 = vshrl.u32 %v604, 7
        %v606 = vsub.s32 0, %v605
        %v607 = vrot.slane %v602, %v606
        %v609 = vmul.f32 %v599, %v607
        %v610 = vld [vmem:[#allocation3] sm:$0x1]
        %v612 = vlaneseq
        %v613 = vshrl.u32 %v612, 7
        %v614 = vsub.s32 0, %v613
        %v615 = vrot.slane %v610, %v614
        %v617 = vadd.f32 %v609, %v615
        %618 = vst [vmem:[%s358] sm:$0xff] %v617
        %s619 = sand.u32 %s208, 1
        %s620 = scalar_lea.sflag [#allocation6], %s619
        %s621 = sand.u32 %s208, 1
        %s622 = smul.addr %s621, 8
        %s623 = scalar_lea.vmem [#allocation10], %s622
        // Predicated region
        $region65: #{tpu_custom_call.1} parent=47 // pred_check
          %p624 = pneg %p218
        $region66: #{tpu_custom_call.1} parent=47 // pred_check_branch
          %626 = sbr.rel (%p624) target = $region68
        $region67: #{tpu_custom_call.1} parent=47 // pred_region
          %s628 = ssub.s32 128, 128
          %629 = vsyncadd %s620, %s628
          %s630 = sadd.s32 %s32, %s31
          %s631 = smul.addr %s630, 128
          %s632 = scalar_lea.hbm %s7, %s631
          %s634 = sshll.u32 %s623, 4
          %s635 = int_to_ptr.vmem [resolvable:$true] %s634
          %637 = dma.vmem_to_hbm [thread:$0]  %s635, 128, %s632, %s620
        $region68: #{tpu_custom_call.1} parent=47 // pred_fallthru
          _
      $region48: #{tpu_custom_call.1} parent=5 // pred_fallthru
        _
      %p638 = scmp.le.s32.totalorder 2, %s22
      // Predicated region
      $region69: #{tpu_custom_call.1} parent=5 // pred_check
        %p639 = pneg %p638
      $region70: #{tpu_custom_call.1} parent=5 // pred_check_branch
        %641 = sbr.rel (%p639) target = $region72
      $region71: #{tpu_custom_call.1} parent=5 // pred_region
        %s642 = ssub.s32 %s22, 2
        // Predicated region
        $region73: #{tpu_custom_call.1} parent=71 // pred_check
          %p643 = pneg %p224
        $region74: #{tpu_custom_call.1} parent=71 // pred_check_branch
          %645 = sbr.rel (%p643) target = $region76
        $region75: #{tpu_custom_call.1} parent=71 // pred_region
          %s646 = sand.u32 %s209, 1
          %s647 = scalar_lea.sflag [#allocation6], %s646
          %s648 = sand.u32 %s209, 1
          %s649 = smul.addr %s648, 8
          %s650 = scalar_lea.vmem [#allocation10], %s649
          %651 = dma.done %s647, 128
        $region76: #{tpu_custom_call.1} parent=71 // pred_fallthru
          _
      $region72: #{tpu_custom_call.1} parent=5 // pred_fallthru
        _
    $region6: #{tpu_custom_call.1} parent=1 // loop_footer
      %s26 = sadd.s32 1, %s22
    $region7: #{tpu_custom_call.1} parent=1 // loop_footer_branch
      %21 = sbr.rel target = $region3
    $region8: #{tpu_custom_call.1} parent=1 // loop_exit
      _
    %652 = vsyncpa [#allocation5], 1
    %s653 = scalar_lea.sflag [#allocation5], 1
    %654 = vsyncpa %s653, 1
    %655 = vsyncpa [#allocation8], 1
    %s656 = scalar_lea.sflag [#allocation8], 1
    %657 = vsyncpa %s656, 1
    %658 = vsyncpa [#allocation6], 1
    %s659 = scalar_lea.sflag [#allocation6], 1
    %660 = vsyncpa %s659, 1

</llo_original>
